<compile_context>
chip_gen: v5e
topology: v5e:2x2
jax: 0.10.0
libtpu: 0.0.40
codegen_flags: <defaults>
</compile_context>

<pallas_src>
import math
from functools import partial

import jax
import jax.numpy as jnp
from jax.experimental import pallas as pl
from jax.experimental.pallas import tpu as pltpu


# ----------------------------- in-kernel helpers -----------------------------

def _ln(x, g, b, eps):
    """LayerNorm on a f32 value (mean/var reductions stay in f32)."""
    mu = jnp.mean(x, axis=-1, keepdims=True)
    var = jnp.mean((x - mu) ** 2, axis=-1, keepdims=True)
    return (x - mu) * jax.lax.rsqrt(var + eps) * g + b


def _gelu_exact(x):
    """Exact (erf) GELU as used by BERT, in f32."""
    return 0.5 * x * (1.0 + jax.lax.erf(x * 0.7071067811865476))


# ----------------------------- Pallas kernels -----------------------------

def _layernorm_kernel(x_ref, g_ref, b_ref, o_ref, *, eps):
    o_ref[...] = _ln(x_ref[...], g_ref[...], b_ref[...], eps)


def embed_layernorm(x2d, gamma, beta, eps=1e-12):
    """Embedding LayerNorm over a lane-dense (B*S, H) slab (single launch)."""
    M, H = x2d.shape
    return pl.pallas_call(
        partial(_layernorm_kernel, eps=eps),
        out_shape=jax.ShapeDtypeStruct((M, H), jnp.float32),
        in_specs=[pl.BlockSpec(memory_space=pltpu.MemorySpace.VMEM)] * 3,
        out_specs=pl.BlockSpec(memory_space=pltpu.MemorySpace.VMEM),
    )(x2d, gamma.reshape(1, H), beta.reshape(1, H))


def _encoder_layer_kernel(x_ref, mask_ref,
                          wqkv_ref, bqkv_ref, wo_ref, bo_ref, g1_ref, b1_ref,
                          wi_ref, bi_ref, wo2_ref, bo2_ref, g2_ref, b2_ref,
                          o_ref, ctx_ref, *, n_heads, scale, eps):
    """One full BERT encoder layer for one batch element, fully VMEM-resident.

    x_ref: (S, H) f32 activations; mask_ref: (1, S) f32 additive attention mask.
    Matmuls use bf16 operands with f32 accumulation; LN/softmax/GELU stay in f32.
    """
    x = x_ref[...]                                   # (S, H) f32
    H = x.shape[-1]
    D = H // n_heads

    # ---- fused QKV projection: one (H, 3H) matmul ----
    qkv = jnp.dot(x.astype(jnp.bfloat16), wqkv_ref[...],
                  preferred_element_type=jnp.float32) + bqkv_ref[...]   # (S, 3H) f32
    q = qkv[:, 0:H]
    k = qkv[:, H:2 * H]
    v = qkv[:, 2 * H:3 * H]
    mask = mask_ref[...]                              # (1, S) f32, broadcast over queries

    # ---- per-head attention (softmax in f32, approx reciprocal on EUP) ----
    for h in range(n_heads):
        qh = q[:, h * D:(h + 1) * D].astype(jnp.bfloat16)
        kh = k[:, h * D:(h + 1) * D].astype(jnp.bfloat16)
        vh = v[:, h * D:(h + 1) * D].astype(jnp.bfloat16)
        s = jax.lax.dot_general(qh, kh, (((1,), (1,)), ((), ())),
                                preferred_element_type=jnp.float32)     # (S, S) = q @ k^T
        s = s * scale + mask
        m = jnp.max(s, axis=-1, keepdims=True)
        p = jnp.exp(s - m)
        p = p * pl.reciprocal(jnp.sum(p, axis=-1, keepdims=True), approx=True)
        ctx_ref[:, h * D:(h + 1) * D] = jnp.dot(p.astype(jnp.bfloat16), vh,
                                                preferred_element_type=jnp.float32)

    # ---- attention output projection + residual-fused LayerNorm ----
    attn = jnp.dot(ctx_ref[...].astype(jnp.bfloat16), wo_ref[...],
                   preferred_element_type=jnp.float32) + bo_ref[...]
    x1 = _ln(attn + x, g1_ref[...], b1_ref[...], eps)

    # ---- feed-forward (GELU) + residual-fused LayerNorm ----
    ff = jnp.dot(x1.astype(jnp.bfloat16), wi_ref[...],
                 preferred_element_type=jnp.float32) + bi_ref[...]
    ff = _gelu_exact(ff)
    ff2 = jnp.dot(ff.astype(jnp.bfloat16), wo2_ref[...],
                  preferred_element_type=jnp.float32) + bo2_ref[...]
    o_ref[...] = _ln(ff2 + x1, g2_ref[...], b2_ref[...], eps)


def encoder_layer(x, add_mask, lyr, n_heads):
    """x: (B, S, H) f32, add_mask: (B, 1, S) f32 additive mask -> (B, S, H) f32."""
    B, S, H = x.shape
    # Fuse Q/K/V into one (H, 3H) weight; pre-cast matmul weights to bf16 (halves DMA bytes).
    wqkv = jnp.concatenate([lyr["q"]["w"], lyr["k"]["w"], lyr["v"]["w"]], axis=1).astype(jnp.bfloat16)
    bqkv = jnp.concatenate([lyr["q"]["b"], lyr["k"]["b"], lyr["v"]["b"]]).reshape(1, 3 * H)
    wo = lyr["attn_out"]["w"].astype(jnp.bfloat16)
    bo = lyr["attn_out"]["b"].reshape(1, H)
    wi = lyr["ffn_in"]["w"].astype(jnp.bfloat16)
    I = wi.shape[1]
    bi = lyr["ffn_in"]["b"].reshape(1, I)
    wo2 = lyr["ffn_out"]["w"].astype(jnp.bfloat16)
    bo2 = lyr["ffn_out"]["b"].reshape(1, H)
    g1 = lyr["attn_ln_g"].reshape(1, H)
    b1 = lyr["attn_ln_b"].reshape(1, H)
    g2 = lyr["ffn_ln_g"].reshape(1, H)
    b2 = lyr["ffn_ln_b"].reshape(1, H)

    def full2d(shape):
        return pl.BlockSpec(shape, lambda b: (0, 0))   # weight blocks: constant index -> no re-DMA

    return pl.pallas_call(
        partial(_encoder_layer_kernel, n_heads=n_heads,
                scale=1.0 / math.sqrt(H // n_heads), eps=1e-12),
        out_shape=jax.ShapeDtypeStruct((B, S, H), jnp.float32),
        grid=(B,),
        in_specs=[
            pl.BlockSpec((None, S, H), lambda b: (b, 0, 0)),   # x (per-batch block)
            pl.BlockSpec((None, 1, S), lambda b: (b, 0, 0)),   # additive mask (per-batch block)
            full2d((H, 3 * H)), full2d((1, 3 * H)),            # fused QKV
            full2d((H, H)), full2d((1, H)),                    # attn output proj
            full2d((1, H)), full2d((1, H)),                    # LN1 gamma/beta
            full2d((H, I)), full2d((1, I)),                    # FFN in
            full2d((I, H)), full2d((1, H)),                    # FFN out
            full2d((1, H)), full2d((1, H)),                    # LN2 gamma/beta
        ],
        out_specs=pl.BlockSpec((None, S, H), lambda b: (b, 0, 0)),
        scratch_shapes=[pltpu.VMEM((S, H), jnp.float32)],      # assembled attention context
        compiler_params=pltpu.CompilerParams(dimension_semantics=("parallel",)),
    )(x, add_mask, wqkv, bqkv, wo, bo, g1, b1, wi, bi, wo2, bo2, g2, b2)


def _head_kernel(cls_ref, wp_ref, bp_ref, wc_ref, bc_ref, o_ref):
    """Fused BERT pooler (dense + tanh on [CLS]) + classifier head."""
    pooled = jnp.tanh(jnp.dot(cls_ref[...].astype(jnp.bfloat16), wp_ref[...],
                              preferred_element_type=jnp.float32) + bp_ref[...])
    # dropout p=0.3 on pooled output: identity in eval mode.
    o_ref[...] = jnp.dot(pooled.astype(jnp.bfloat16), wc_ref[...],
                         preferred_element_type=jnp.float32) + bc_ref[...]


def pooler_classifier(cls, pooler, classifier):
    B, H = cls.shape
    C = classifier["w"].shape[1]
    return pl.pallas_call(
        _head_kernel,
        out_shape=jax.ShapeDtypeStruct((B, C), jnp.float32),
        in_specs=[pl.BlockSpec(memory_space=pltpu.MemorySpace.VMEM)] * 5,
        out_specs=pl.BlockSpec(memory_space=pltpu.MemorySpace.VMEM),
    )(cls, pooler["w"].astype(jnp.bfloat16), pooler["b"].reshape(1, H),
      classifier["w"].astype(jnp.bfloat16), classifier["b"].reshape(1, C))


# --------------------------- model configuration ---------------------------

CFG = dict(
    vocab_size=64,    # tiny synthetic vocab (bert-base-cased: 28996)
    max_pos=16,       # max position embeddings
    type_vocab=2,
    hidden=32,        # bert-base: 768 -> small shape 32
    heads=4,          # bert-base: 12
    layers=2,         # bert-base: 12
    intermediate=64,  # bert-base: 3072
    n_classes=3,
)


def init_params(key, cfg):
    """Deterministic synthetic parameters (no checkpoint load)."""
    H, I = cfg["hidden"], cfg["intermediate"]
    key_box = [key]

    def nxt():
        key_box[0], sub = jax.random.split(key_box[0])
        return sub

    def dense(k_in, k_out):
        return {"w": jax.random.normal(nxt(), (k_in, k_out), jnp.float32) * 0.02,
                "b": jnp.zeros((k_out,), jnp.float32)}

    params = {
        "word_emb": jax.random.normal(nxt(), (cfg["vocab_size"], H), jnp.float32) * 0.02,
        "pos_emb":  jax.random.normal(nxt(), (cfg["max_pos"], H), jnp.float32) * 0.02,
        "type_emb": jax.random.normal(nxt(), (cfg["type_vocab"], H), jnp.float32) * 0.02,
        "emb_ln_g": jnp.ones((H,), jnp.float32),
        "emb_ln_b": jnp.zeros((H,), jnp.float32),
        "layers": [],
        "pooler": dense(H, H),
        "classifier": dense(H, cfg["n_classes"]),   # self.out = nn.Linear(hidden, n_classes)
    }
    for _ in range(cfg["layers"]):
        params["layers"].append({
            "q": dense(H, H), "k": dense(H, H), "v": dense(H, H),
            "attn_out": dense(H, H),
            "attn_ln_g": jnp.ones((H,), jnp.float32),
            "attn_ln_b": jnp.zeros((H,), jnp.float32),
            "ffn_in": dense(H, I),
            "ffn_out": dense(I, H),
            "ffn_ln_g": jnp.ones((H,), jnp.float32),
            "ffn_ln_b": jnp.zeros((H,), jnp.float32),
        })
    return params


# ------------------------------ forward pass -------------------------------

def sentiment_classifier_forward(params, input_ids, attention_mask, cfg):
    B, S = input_ids.shape
    H = cfg["hidden"]
    nH = cfg["heads"]

    # BERT embeddings: word + position + token_type (all-zero segment ids), then LayerNorm.
    x = (params["word_emb"][input_ids]
         + params["pos_emb"][jnp.arange(S)][None, :, :]
         + params["type_emb"][jnp.zeros((B, S), jnp.int32)])
    x = embed_layernorm(x.reshape(B * S, H),
                        params["emb_ln_g"], params["emb_ln_b"]).reshape(B, S, H)
    # embedding dropout: identity at inference.

    # Extended additive attention mask: 0 where attended, -1e4 where masked (kept in f32).
    add_mask = ((1.0 - attention_mask.astype(jnp.float32)) * -10000.0).reshape(B, 1, S)

    # Encoder: one fused Pallas kernel launch per layer.
    for lyr in params["layers"]:
        x = encoder_layer(x, add_mask, lyr, nH)

    # Pooler (dense + tanh on the [CLS] token) + dropout (identity, eval) + classifier head.
    # TODO(synk): training-mode dropout (p=0.3 stochastic masking) not implemented; eval semantics used.
    cls = x[:, 0, :]                                   # (B, H)
    logits = pooler_classifier(cls, params["pooler"], params["classifier"])
    return logits                                      # (B, n_classes)


# ----------------------------------- main -----------------------------------

if __name__ == "__main__":
    cfg = CFG
    key = jax.random.PRNGKey(0)
    pkey, ikey = jax.random.split(key)
    params = init_params(pkey, cfg)

    B, S = 2, 8
    input_ids = jax.random.randint(ikey, (B, S), 0, cfg["vocab_size"], dtype=jnp.int32)
    attention_mask = jnp.ones((B, S), jnp.int32).at[1, 6:].set(0)  # pad out last 2 tokens of row 1

    logits = sentiment_classifier_forward(params, input_ids, attention_mask, cfg)
    logits = jax.block_until_ready(logits)
    assert logits.shape == (B, cfg["n_classes"])
    assert bool(jnp.all(jnp.isfinite(logits)))
    print("KERNEL_OK")
</pallas_src>

<mosaic_0001>
module attributes {stable_mosaic.version = 11 : i64} {
  func.func @_layernorm_kernel(%arg0: memref<16x32xf32, #tpu.memory_space<vmem>>, %arg1: memref<1x32xf32, #tpu.memory_space<vmem>>, %arg2: memref<1x32xf32, #tpu.memory_space<vmem>>, %arg3: memref<16x32xf32, #tpu.memory_space<vmem>>) attributes {dimension_semantics = [], scalar_prefetch = 0 : i64, scratch_operands = 0 : i64, tpu.core_type = #tpu.core_type<tc>} {
    %c0 = arith.constant 0 : index
    %c0_0 = arith.constant 0 : index
    %0 = vector.load %arg0[%c0, %c0_0] : memref<16x32xf32, #tpu.memory_space<vmem>>, vector<16x32xf32>
    %c0_1 = arith.constant 0 : index
    %c0_2 = arith.constant 0 : index
    %1 = vector.load %arg1[%c0_1, %c0_2] : memref<1x32xf32, #tpu.memory_space<vmem>>, vector<1x32xf32>
    %c0_3 = arith.constant 0 : index
    %c0_4 = arith.constant 0 : index
    %2 = vector.load %arg2[%c0_3, %c0_4] : memref<1x32xf32, #tpu.memory_space<vmem>>, vector<1x32xf32>
    %cst = arith.constant dense<0.000000e+00> : vector<16xf32>
    %3 = vector.multi_reduction <add>, %0, %cst [1] : vector<16x32xf32> to vector<16xf32>
    %4 = vector.shape_cast %3 : vector<16xf32> to vector<16x1xf32>
    %cst_5 = arith.constant 3.200000e+01 : f32
    %5 = vector.broadcast %cst_5 : f32 to vector<16x1xf32>
    %6 = arith.divf %4, %5 : vector<16x1xf32>
    %7 = vector.broadcast %6 : vector<16x1xf32> to vector<16x32xf32>
    %8 = arith.subf %0, %7 : vector<16x32xf32>
    %9 = arith.mulf %8, %8 : vector<16x32xf32>
    %cst_6 = arith.constant dense<0.000000e+00> : vector<16xf32>
    %10 = vector.multi_reduction <add>, %9, %cst_6 [1] : vector<16x32xf32> to vector<16xf32>
    %11 = vector.shape_cast %10 : vector<16xf32> to vector<16x1xf32>
    %cst_7 = arith.constant 3.200000e+01 : f32
    %12 = vector.broadcast %cst_7 : f32 to vector<16x1xf32>
    %13 = arith.divf %11, %12 : vector<16x1xf32>
    %14 = vector.broadcast %6 : vector<16x1xf32> to vector<16x32xf32>
    %15 = arith.subf %0, %14 : vector<16x32xf32>
    %cst_8 = arith.constant 9.99999996E-13 : f32
    %16 = vector.broadcast %cst_8 : f32 to vector<16x1xf32>
    %17 = arith.addf %13, %16 : vector<16x1xf32>
    %18 = math.rsqrt %17 : vector<16x1xf32>
    %19 = vector.broadcast %18 : vector<16x1xf32> to vector<16x32xf32>
    %20 = arith.mulf %15, %19 : vector<16x32xf32>
    %21 = vector.broadcast %1 : vector<1x32xf32> to vector<16x32xf32>
    %22 = arith.mulf %20, %21 : vector<16x32xf32>
    %23 = vector.broadcast %2 : vector<1x32xf32> to vector<16x32xf32>
    %24 = arith.addf %22, %23 : vector<16x32xf32>
    %c0_9 = arith.constant 0 : index
    %c0_10 = arith.constant 0 : index
    %25 = vector.load %arg3[%c0_9, %c0_10] : memref<16x32xf32, #tpu.memory_space<vmem>>, vector<16x32xf32>
    tpu.vector_store %arg3[%c0_9, %c0_10], %24 {strides = array<i32>} : memref<16x32xf32, #tpu.memory_space<vmem>>, vector<16x32xf32>,
    return
  }
}

</mosaic_0001>

<llo_original>
// kernel: tpu_custom_call.1
$region0: #{tpu_custom_call.1}
  #allocation0 [shape = 'u32[]', space=smem, size = 0x4, offset = 0x4, fixed_abs, tag = 'smem constant byte address 0x4 - core index']
  #allocation1 [shape = 'u32[72,128]{1,0:T(1,128)}', space=vmem, size = 0x9000, scoped, tag = 'internal scratch']
  %s0 = inlined_call_operand.hbm [shape: f32[16,32], index: 0, kind: input, shape index: {}]
  %s1 = inlined_call_operand.hbm [shape: f32[1,32], index: 1, kind: input, shape index: {}]
  %s2 = inlined_call_operand.vmem [shape: f32[1,32], index: 2, kind: input, shape index: {}]
  %s3 = inlined_call_operand.hbm [shape: f32[16,32], index: 3, kind: output, shape index: {}]
  %s4 = sld [smem:[#allocation0]]
  $region30: #{tpu_custom_call.1} parent=0
    _
  %s6 = ssub.s32 1, %s4
  %s7 = scalar_select 0, %s6, %s4
  $region1: #{tpu_custom_call.1} parent=0
    #allocation2 [shape = 'u8[8192]{0}', space=vmem, size = 0x2000, scoped, tag = 'input window, operand 0, single buffered']
    #allocation3 [shape = 's32[1]{0}', space=sflag, size = 0x4, scoped, tag = 'scoped memory for tpu_custom_call.1']
    #allocation4 [shape = 's32[1]{0}', space=sflag, size = 0x4, scoped, tag = 'scoped memory for tpu_custom_call.1']
    #allocation5 [shape = 'u8[512]{0}', space=vmem, size = 0x400, scoped, tag = 'input window, operand 1, single buffered']
    #allocation6 [shape = 's32[1]{0}', space=sflag, size = 0x4, scoped, tag = 'scoped memory for tpu_custom_call.1']
    #allocation7 [shape = 'u8[8192]{0}', space=vmem, size = 0x2000, scoped, tag = 'output window, operand 0, single buffered']
    %8 = vsyncpa [#allocation3], 0
    %9 = vsyncpa [#allocation6], 0
    %10 = vsyncpa [#allocation4], 0
    // Predicated region
    $region2: #{tpu_custom_call.1} parent=1 // pred_check
      _
    $region3: #{tpu_custom_call.1} parent=1 // pred_check_branch
      %12 = sbr.rel (0) target = $region5
    $region4: #{tpu_custom_call.1} parent=1 // pred_region
      %14 = vsyncadd [#allocation3], 0
      %s15 = sshll.u32 %s0, 4
      %s16 = int_to_ptr.hbm [resolvable:$true] %s15
      %s17 = sshll.u32 [#allocation2], 4
      %s18 = int_to_ptr.vmem [resolvable:$true] %s17
      %23 = dma.hbm_to_vmem [thread:$0]  %s16, 256, %s18, [#allocation3], 128, 128, 8
    $region5: #{tpu_custom_call.1} parent=1 // pred_fallthru
      _
    // Predicated region
    $region6: #{tpu_custom_call.1} parent=1 // pred_check
      _
    $region7: #{tpu_custom_call.1} parent=1 // pred_check_branch
      %25 = sbr.rel (0) target = $region9
    $region8: #{tpu_custom_call.1} parent=1 // pred_region
      %27 = vsyncadd [#allocation6], 0
      %s29 = sshll.u32 %s1, 4
      %s30 = int_to_ptr.hbm [resolvable:$true] %s29
      %s31 = sshll.u32 [#allocation5], 4
      %s32 = int_to_ptr.vmem [resolvable:$true] %s31
      %34 = dma.hbm_to_vmem [thread:$0]  %s30, 16, %s32, [#allocation6]
    $region9: #{tpu_custom_call.1} parent=1 // pred_fallthru
      _
    // Predicated region
    $region10: #{tpu_custom_call.1} parent=1 // pred_check
      _
    $region11: #{tpu_custom_call.1} parent=1 // pred_check_branch
      %36 = sbr.rel (0) target = $region13
    $region12: #{tpu_custom_call.1} parent=1 // pred_region
      _
    $region13: #{tpu_custom_call.1} parent=1 // pred_fallthru
      _
    // Predicated region
    $region14: #{tpu_custom_call.1} parent=1 // pred_check
      _
    $region15: #{tpu_custom_call.1} parent=1 // pred_check_branch
      %38 = sbr.rel (0) target = $region17
    $region16: #{tpu_custom_call.1} parent=1 // pred_region
      %40 = dma.done [#allocation3], 256
    $region17: #{tpu_custom_call.1} parent=1 // pred_fallthru
      _
    // Predicated region
    $region18: #{tpu_custom_call.1} parent=1 // pred_check
      _
    $region19: #{tpu_custom_call.1} parent=1 // pred_check_branch
      %42 = sbr.rel (0) target = $region21
    $region20: #{tpu_custom_call.1} parent=1 // pred_region
      %44 = dma.done [#allocation6], 16
    $region21: #{tpu_custom_call.1} parent=1 // pred_fallthru
      _
    %v45 = vld [vmem:[#allocation2] sm:$0xff]
    %v46 = vld [vmem:[#allocation2 + $0x8] sm:$0xff]
    %v47 = vld [vmem:[#allocation5] sm:$0x1]
    %v48 = vld [vmem:[%s2] sm:$0x1]
    %vm49 = vcmask 261120
    %v50 = vsel %vm49, %v45, 0.0
    %51 = vadd.xlane.f32.xlu0 %v50
    %v52 = vpop.xlane.xlu0 %51
    %v53 = vsel %vm49, %v46, 0.0
    %54 = vadd.xlane.f32.xlu0 %v53
    %v55 = vpop.xlane.xlu0 %54
    %v56 = vrcp.pop 32.0
    %v57 = vmul.f32 32.0, %v56
    %v58 = vsub.f32 1.0, %v57
    %v59 = vmul.f32 %v56, %v58
    %v60 = vadd.f32 %v56, %v59
    %vm61 = vweird.f32 %v56
    %v62 = vsel %vm61, %v56, %v60
    %v63 = vmul.f32 %v52, %v62
    %v64 = vmul.f32 %v55, %v62
    %v65 = vsub.f32 %v45, %v63
    %v66 = vsub.f32 %v46, %v64
    %v67 = vmul.f32 %v65, %v65
    %v68 = vmul.f32 %v66, %v66
    %v69 = vsel %vm49, %v67, 0.0
    %70 = vadd.xlane.f32.xlu0 %v69
    %v71 = vpop.xlane.xlu0 %70
    %v72 = vsel %vm49, %v68, 0.0
    %73 = vadd.xlane.f32.xlu0 %v72
    %v74 = vpop.xlane.xlu0 %73
    %v75 = vmul.f32 %v71, %v62
    %v76 = vmul.f32 %v74, %v62
    %v77 = vadd.f32 %v75, 1e-12
    %v78 = vadd.f32 %v76, 1e-12
    %v79 = vrsqrt.pop %v77
    %v80 = vmul.f32 %v79, %v77
    %v81 = vmul.f32 %v80, %v79
    %v82 = vmul.f32 0.5, %v81
    %v83 = vsub.f32 1.5, %v82
    %v84 = vmul.f32 %v79, %v83
    %vm85 = vweird.f32 %v77
    %vm86 = vweird.f32 %v79
    %vm87 = vmor %vm85, %vm86
    %v88 = vsel %vm87, %v79, %v84
    %v89 = vrsqrt.pop %v78
    %v90 = vmul.f32 %v89, %v78
    %v91 = vmul.f32 %v90, %v89
    %v92 = vmul.f32 0.5, %v91
    %v93 = vsub.f32 1.5, %v92
    %v94 = vmul.f32 %v89, %v93
    %vm95 = vweird.f32 %v78
    %vm96 = vweird.f32 %v89
    %vm97 = vmor %vm95, %vm96
    %v98 = vsel %vm97, %v89, %v94
    %v99 = vmul.f32 %v65, %v88
    %v100 = vmul.f32 %v66, %v98
    %v102 = vperm.slane %v47, 0
    %v104 = vmul.f32 %v99, %v102
    %v105 = vmul.f32 %v100, %v102
    %v107 = vperm.slane %v48, 0
    %v109 = vadd.f32 %v104, %v107
    %v110 = vadd.f32 %v105, %v107
    %111 = vst.msk [vmem:[#allocation7] sm:$0xff] %vm49, %v109
    %112 = vst.msk [vmem:[#allocation7 + $0x8] sm:$0xff] %vm49, %v110
    // Predicated region
    $region22: #{tpu_custom_call.1} parent=1 // pred_check
      _
    $region23: #{tpu_custom_call.1} parent=1 // pred_check_branch
      %114 = sbr.rel (0) target = $region25
    $region24: #{tpu_custom_call.1} parent=1 // pred_region
      %116 = vsyncadd [#allocation4], 0
      %s117 = sshll.u32 [#allocation7], 4
      %s118 = int_to_ptr.vmem [resolvable:$true] %s117
      %s119 = sshll.u32 %s3, 4
      %s120 = int_to_ptr.hbm [resolvable:$true] %s119
      %125 = dma.vmem_to_hbm [thread:$0]  %s118, 256, %s120, [#allocation4], 128, 128, 8
    $region25: #{tpu_custom_call.1} parent=1 // pred_fallthru
      _
    // Predicated region
    $region26: #{tpu_custom_call.1} parent=1 // pred_check
      _
    $region27: #{tpu_custom_call.1} parent=1 // pred_check_branch
      %127 = sbr.rel (0) target = $region29
    $region28: #{tpu_custom_call.1} parent=1 // pred_region
      %129 = dma.done [#allocation4], 256
    $region29: #{tpu_custom_call.1} parent=1 // pred_fallthru
      _
    %130 = vsyncpa [#allocation3], 1
    %131 = vsyncpa [#allocation6], 1
    %132 = vsyncpa [#allocation4], 1

</llo_original>
